<compile_context>
chip_gen: v5e
topology: v5e:2x2
jax: 0.10.0
libtpu: 0.0.40
codegen_flags: <defaults>
</compile_context>

<pallas_src>
import functools

import jax
import jax.numpy as jnp
from jax.experimental import pallas as pl
from jax.experimental.pallas import tpu as pltpu


def _round_up(x, m):
    return ((x + m - 1) // m) * m


def _cdiv(a, b):
    return (a + b - 1) // b


def _fused_kernel(x_ref, w_ref, b_ref, o_ref):
    # one MXU matmul per token tile: x @ (w1 @ w2) + (b1 @ w2 + b2), f32 accumulation
    y = jnp.dot(x_ref[...], w_ref[...], preferred_element_type=jnp.float32)
    o_ref[...] = (y + b_ref[...]).astype(o_ref.dtype)


def _two_matmul_kernel(x_ref, w1_ref, w2_ref, b_ref, o_ref):
    # (x @ w1) @ w2 + b_fused; biases pre-folded so a single broadcast add remains.
    # TODO(synk): when tm >= 1024, loop 256-row sub-tiles (lax.fori_loop, unroll=True) so
    # the f32 intermediate h stays small and doesn't spill (v5e has a single vst slot).
    h = jnp.dot(x_ref[...], w1_ref[...], preferred_element_type=jnp.float32)
    y = jnp.dot(h.astype(w2_ref.dtype), w2_ref[...],
                preferred_element_type=jnp.float32)
    o_ref[...] = (y + b_ref[...]).astype(o_ref.dtype)


@functools.partial(
    jax.jit,
    static_argnames=("ratio", "tm", "compute_dtype", "out_dtype", "fuse_weights"))
def _hybrid_embed_tokens(x, w_backbone, b_backbone, w_proj, b_proj, *,
                         ratio, tm, compute_dtype, out_dtype, fuse_weights):
    B, Cin, H, W = x.shape
    R = ratio
    Dfeat = w_backbone.shape[0]
    E = w_proj.shape[0]
    Hf, Wf = H // R, W // R
    M = B * Hf * Wf
    K1 = Cin * R * R

    # --- token tiling: large tiles (default 512), >=2 grid steps when possible (v7x has
    # two TensorCores), and sized so Mp == M in the common case (no post-call row slice).
    tm_req = max(8, min(tm, _round_up(M, 8)))
    n_tiles = max(_cdiv(M, tm_req), 2 if M >= 16 else 1)
    tm_eff = _round_up(_cdiv(M, n_tiles), 8)
    n_tiles = _cdiv(M, tm_eff)
    Mp = n_tiles * tm_eff

    # Lane-dense output stores; no-op when E is already a multiple of 128 (768, 1024, ...).
    Ep = _round_up(E, 128)

    # --- glue: patchify NCHW -> (M, K1) tokens, (c, kh, kw) order. Kept inside this jit
    # so it can fuse with the kernel's input stream (allow_input_fusion below).
    xp = x.reshape(B, Cin, Hf, R, Wf, R)
    xp = jnp.transpose(xp, (0, 2, 4, 1, 3, 5)).reshape(M, K1)
    if Mp != M:
        xp = jnp.pad(xp, ((0, Mp - M), (0, 0)))      # rows only; K1 left unpadded
    xp = xp.astype(compute_dtype)

    # --- glue: conv weights in matmul form (f32 master copies); fold the backbone bias.
    # Valid only because the backbone is a single linear conv (no BN / nonlinearity).
    w1 = w_backbone.reshape(Dfeat, K1).T.astype(jnp.float32)   # (K1, Dfeat)
    w2 = w_proj.reshape(E, Dfeat).T.astype(jnp.float32)        # (Dfeat, E)
    b_fused = b_backbone.astype(jnp.float32) @ w2 + b_proj.astype(jnp.float32)
    b_pad = jnp.pad(b_fused, (0, Ep - E)).reshape(1, Ep)       # stays f32

    if fuse_weights is None:
        # Favor the single fused matmul when the bottleneck dim is MXU-shallow (<=256,
        # the v6e/v7x MXU depth); otherwise decide on weight bytes.
        fuse_weights = (Dfeat <= 256) or (K1 * Ep <= Dfeat * (K1 + Ep))

    in_itemsize = jnp.dtype(compute_dtype).itemsize
    out_itemsize = jnp.dtype(out_dtype).itemsize

    if fuse_weights:
        w_fused = jnp.pad(w1 @ w2, ((0, 0), (0, Ep - E))).astype(compute_dtype)  # (K1, Ep)
        kernel = _fused_kernel
        in_specs = [
            pl.BlockSpec((tm_eff, K1), lambda i: (i, 0)),
            pl.BlockSpec((K1, Ep), lambda i: (0, 0)),
            pl.BlockSpec((1, Ep), lambda i: (0, 0)),
        ]
        operands = (xp, w_fused, b_pad)
        flops = 2 * Mp * K1 * Ep
        w_bytes = K1 * Ep * in_itemsize
    else:
        Dfp = _round_up(Dfeat, 128)   # weight-only padding (one-time cost, lane-dense h)
        w1_op = jnp.pad(w1, ((0, 0), (0, Dfp - Dfeat))).astype(compute_dtype)
        w2_op = jnp.pad(w2, ((0, Dfp - Dfeat), (0, Ep - E))).astype(compute_dtype)
        kernel = _two_matmul_kernel
        in_specs = [
            pl.BlockSpec((tm_eff, K1), lambda i: (i, 0)),
            pl.BlockSpec((K1, Dfp), lambda i: (0, 0)),
            pl.BlockSpec((Dfp, Ep), lambda i: (0, 0)),
            pl.BlockSpec((1, Ep), lambda i: (0, 0)),
        ]
        operands = (xp, w1_op, w2_op, b_pad)
        flops = 2 * Mp * Dfp * (K1 + Ep)
        w_bytes = (K1 * Dfp + Dfp * Ep) * in_itemsize

    bytes_accessed = int(Mp * K1 * in_itemsize + w_bytes + Ep * 4
                         + Mp * Ep * out_itemsize)

    # VMEM budget: double-buffered x/out tiles + resident (double-buffered) weights/bias,
    # 2x headroom, floored at 32 MiB, capped generation-aware below physical VMEM.
    need = 2 * tm_eff * (K1 * in_itemsize + Ep * out_itemsize) + 2 * (w_bytes + Ep * 4)
    try:
        vmem_cap = pltpu.get_tpu_info().vmem_capacity_bytes   # 128 MiB v5e/v6e, 64 MiB v7x
    except Exception:
        vmem_cap = 64 * 1024 * 1024                           # conservative v7x fallback
    vmem_limit = int(min(max(2 * need, 32 * 1024 * 1024), (vmem_cap * 7) // 8))

    out = pl.pallas_call(
        kernel,
        out_shape=jax.ShapeDtypeStruct((Mp, Ep), out_dtype),
        grid_spec=pltpu.PrefetchScalarGridSpec(
            num_scalar_prefetch=0,
            grid=(n_tiles,),
            in_specs=in_specs,
            out_specs=pl.BlockSpec((tm_eff, Ep), lambda i: (i, 0)),
        ),
        compiler_params=pltpu.CompilerParams(
            dimension_semantics=("parallel",),
            vmem_limit_bytes=vmem_limit,
            # allow the patchify/pad/cast producers of xp to fuse into the kernel input
            allow_input_fusion=[True] + [False] * (len(operands) - 1),
        ),
        cost_estimate=pl.CostEstimate(
            flops=int(flops), transcendentals=0, bytes_accessed=bytes_accessed),
    )(*operands)

    if Mp != M or Ep != E:
        out = out[:M, :E]
    return out.reshape(B, Hf * Wf, E)   # == x.flatten(2).transpose(1,2)


def hybrid_embed_with_size(x, w_backbone, b_backbone, w_proj, b_proj, *,
                           ratio, tm=512, compute_dtype=jnp.bfloat16,
                           out_dtype=None, fuse_weights=None):
    """Pallas implementation of HybridEmbedWithSize.forward.

    Returns (tokens (B, Hf*Wf, E), (Hf, Wf)).
    out_dtype=None -> output written in compute_dtype (bf16 writeback in production).
    """
    if out_dtype is None:
        out_dtype = compute_dtype
    B, Cin, H, W = x.shape
    Hf, Wf = H // ratio, W // ratio
    tokens = _hybrid_embed_tokens(
        x, w_backbone, b_backbone, w_proj, b_proj,
        ratio=ratio, tm=tm, compute_dtype=compute_dtype, out_dtype=out_dtype,
        fuse_weights=fuse_weights)
    return tokens, (Hf, Wf)


def _reference(x, w_backbone, b_backbone, w_proj, b_proj, ratio):
    """Plain-JAX reference of the same forward (for correctness check)."""
    feat = jax.lax.conv_general_dilated(
        x, w_backbone, window_strides=(ratio, ratio), padding="VALID",
        dimension_numbers=("NCHW", "OIHW", "NCHW"))
    feat = feat + b_backbone.reshape(1, -1, 1, 1)
    proj = jax.lax.conv_general_dilated(
        feat, w_proj, window_strides=(1, 1), padding="VALID",
        dimension_numbers=("NCHW", "OIHW", "NCHW"))
    proj = proj + b_proj.reshape(1, -1, 1, 1)
    B, E, Hf, Wf = proj.shape
    tokens = jnp.transpose(proj.reshape(B, E, Hf * Wf), (0, 2, 1))
    return tokens, (Hf, Wf)


if __name__ == "__main__":
    key = jax.random.PRNGKey(0)
    k1, k2, k3, k4, k5 = jax.random.split(key, 5)

    # Small shapes: batch=2, in_chans=4, img=16x16, feature_ratio=4 -> 4x4 feature grid,
    # feature_dim=32, embed_dim=64, patch_size=1 (HybridEmbed default).
    B, Cin, H, W = 2, 4, 16, 16
    R = 4          # backbone downsample (feature_ratio)
    Dfeat = 32     # backbone output channels (feature_dim)
    E = 64         # embed_dim

    x = jax.random.normal(k1, (B, Cin, H, W), dtype=jnp.float32)
    w_backbone = 0.1 * jax.random.normal(k2, (Dfeat, Cin, R, R), dtype=jnp.float32)
    b_backbone = 0.1 * jax.random.normal(k3, (Dfeat,), dtype=jnp.float32)
    w_proj = 0.1 * jax.random.normal(k4, (E, Dfeat, 1, 1), dtype=jnp.float32)
    b_proj = 0.1 * jax.random.normal(k5, (E,), dtype=jnp.float32)

    ref_tokens, ref_hw = _reference(x, w_backbone, b_backbone, w_proj, b_proj, R)

    # 1) f32 compute / f32 out, auto weight-fusion (fused branch here): tight check.
    tok_f32, hw = hybrid_embed_with_size(
        x, w_backbone, b_backbone, w_proj, b_proj, ratio=R,
        compute_dtype=jnp.float32)
    tok_f32 = jax.block_until_ready(tok_f32)
    assert tok_f32.shape == (B, (H // R) * (W // R), E), tok_f32.shape
    assert hw == ref_hw == (H // R, W // R)
    assert jnp.allclose(tok_f32, ref_tokens, atol=1e-4, rtol=1e-4)

    # 2) f32 compute, forced two-matmul branch: tight check.
    tok_2mm, _ = hybrid_embed_with_size(
        x, w_backbone, b_backbone, w_proj, b_proj, ratio=R,
        compute_dtype=jnp.float32, fuse_weights=False)
    tok_2mm = jax.block_until_ready(tok_2mm)
    assert jnp.allclose(tok_2mm, ref_tokens, atol=1e-4, rtol=1e-4)

    # 3) production path: bf16 MXU compute + bf16 writeback (f32 accumulation): loose check.
    tok_bf16, _ = hybrid_embed_with_size(
        x, w_backbone, b_backbone, w_proj, b_proj, ratio=R)
    tok_bf16 = jax.block_until_ready(tok_bf16)
    assert tok_bf16.dtype == jnp.bfloat16
    assert jnp.allclose(tok_bf16.astype(jnp.float32), ref_tokens, atol=5e-2, rtol=5e-2)

    print("KERNEL_OK")
</pallas_src>

<mosaic_0001>
module attributes {stable_mosaic.version = 11 : i64} {
  func.func @_fused_kernel(%arg0: i32, %arg1: memref<16x64xf32, #tpu.memory_space<vmem>>, %arg2: memref<64x128xf32, #tpu.memory_space<vmem>>, %arg3: memref<1x128xf32, #tpu.memory_space<vmem>>, %arg4: memref<16x128xf32, #tpu.memory_space<vmem>>) attributes {dimension_semantics = [#tpu.dimension_semantics<parallel>], iteration_bounds = array<i64: 2>, scalar_prefetch = 0 : i64, scratch_operands = 0 : i64, tpu.core_type = #tpu.core_type<tc>, window_params = [{transform_indices = @transform_0, window_bounds = array<i64: 16, 64>}, {pipeline_mode = #tpu.pipeline_mode<synchronous>, transform_indices = @transform_1, window_bounds = array<i64: 64, 128>}, {pipeline_mode = #tpu.pipeline_mode<synchronous>, transform_indices = @transform_2, window_bounds = array<i64: 1, 128>}, {transform_indices = @transform_3, window_bounds = array<i64: 16, 128>}]} {
    %c0 = arith.constant 0 : index
    %c0_0 = arith.constant 0 : index
    %0 = vector.load %arg1[%c0, %c0_0] : memref<16x64xf32, #tpu.memory_space<vmem>>, vector<16x64xf32>
    %c0_1 = arith.constant 0 : index
    %c0_2 = arith.constant 0 : index
    %1 = vector.load %arg2[%c0_1, %c0_2] : memref<64x128xf32, #tpu.memory_space<vmem>>, vector<64x128xf32>
    %cst = arith.constant dense<0.000000e+00> : vector<16x128xf32>
    %2 = tpu.matmul %0, %1, %cst {dimension_numbers = #tpu.dot_dimension_numbers<[1], [0], [0], [1], [0, 0, 1, 1], [], []>} : vector<16x64xf32>, vector<64x128xf32>, vector<16x128xf32> -> vector<16x128xf32>
    %c0_3 = arith.constant 0 : index
    %c0_4 = arith.constant 0 : index
    %3 = vector.load %arg3[%c0_3, %c0_4] : memref<1x128xf32, #tpu.memory_space<vmem>>, vector<1x128xf32>
    %4 = vector.broadcast %3 : vector<1x128xf32> to vector<16x128xf32>
    %5 = arith.addf %2, %4 : vector<16x128xf32>
    %c0_5 = arith.constant 0 : index
    %c0_6 = arith.constant 0 : index
    %6 = vector.load %arg4[%c0_5, %c0_6] : memref<16x128xf32, #tpu.memory_space<vmem>>, vector<16x128xf32>
    tpu.vector_store %arg4[%c0_5, %c0_6], %5 {strides = array<i32>} : memref<16x128xf32, #tpu.memory_space<vmem>>, vector<16x128xf32>,
    return
  }
  func.func @transform_0(%arg0: i32) -> (i32, i32) {
    %c0_i32 = arith.constant 0 : i32
    %c0_i32_0 = arith.constant 0 : i32
    return %arg0, %c0_i32 : i32, i32
  }
  func.func @transform_1(%arg0: i32) -> (i32, i32) {
    %c0_i32 = arith.constant 0 : i32
    %c0_i32_0 = arith.constant 0 : i32
    %c0_i32_1 = arith.constant 0 : i32
    return %c0_i32, %c0_i32_0 : i32, i32
  }
  func.func @transform_2(%arg0: i32) -> (i32, i32) {
    %c0_i32 = arith.constant 0 : i32
    %c0_i32_0 = arith.constant 0 : i32
    %c0_i32_1 = arith.constant 0 : i32
    return %c0_i32, %c0_i32_0 : i32, i32
  }
  func.func @transform_3(%arg0: i32) -> (i32, i32) {
    %c0_i32 = arith.constant 0 : i32
    %c0_i32_0 = arith.constant 0 : i32
    return %arg0, %c0_i32 : i32, i32
  }
}

</mosaic_0001>

<llo_original>
// kernel: _hybrid_embed_tokens.1
$region0: #{_hybrid_embed_tokens.1}
  #allocation0 [shape = 'u32[]', space=smem, size = 0x4, offset = 0x4, fixed_abs, tag = 'smem constant byte address 0x4 - core index']
  #allocation1 [shape = 'u32[72,128]{1,0:T(1,128)}', space=vmem, size = 0x9000, scoped, tag = 'internal scratch']
  %s0 = inlined_call_operand.vmem [shape: f32[32,64], index: 0, kind: input, shape index: {}]
  %s1 = inlined_call_operand.vmem [shape: f32[64,128], index: 1, kind: input, shape index: {}]
  %s2 = inlined_call_operand.vmem [shape: f32[1,128], index: 2, kind: input, shape index: {}]
  %s3 = inlined_call_operand.hbm [shape: f32[32,128], index: 3, kind: output, shape index: {}]
  %s4 = sld [smem:[#allocation0]]
  $region45: #{_hybrid_embed_tokens.1} parent=0
    _
  %s6 = ssub.s32 1, %s4
  %s7 = scalar_select 0, %s6, %s4
  $region1: #{_hybrid_embed_tokens.1} parent=0
    #allocation2 [shape = 'u8[16384]{0}', space=vmem, size = 0x4000, scoped, tag = 'output window, operand 0']
    #allocation3 [shape = 's32[2]{0}', space=sflag, size = 0x8, scoped, tag = 'scoped memory for _hybrid_embed_tokens.1']
    %8 = vsyncpa [#allocation3], 0
    %s9 = scalar_lea.sflag [#allocation3], 1
    %10 = vsyncpa %s9, 0
    loop: start=0, step=1, limit=4
    $region2: #{_hybrid_embed_tokens.1} parent=1 // loop_pre_header
      _
    $region3: #{_hybrid_embed_tokens.1} parent=1 // loop_header
      %s12 = sphi 0, %s16
      %p13 = scmp.ge.s32.totalorder %s12, 4
      %s22 = sphi 0, %s24
      %s25 = sphi 0, %s22
      %s26 = sphi 0, %s25
      %s42 = sphi 0, %s26
      %s46 = sphi 0, %s46
      %s48 = sphi 0, %s46
      %s49 = sphi 0, %s48
      %s63 = sphi 0, %s49
      %s67 = sphi 0, %s67
      %s69 = sphi 0, %s67
      %s70 = sphi 0, %s69
      %s84 = sphi 0, %s70
      %s90 = sphi 0, %s92
      %s93 = sphi 0, %s90
      %s94 = sphi 0, %s93
      %s110 = sphi 0, %s94
    $region4: #{_hybrid_embed_tokens.1} parent=1 // loop_header_branch
      %15 = sbr.rel (%p13) target = $region8
    $region5: #{_hybrid_embed_tokens.1} parent=1 // loop_body
      %s17 = ssub.s32 %s12, 1
      %s18 = ssub.s32 %s12, 2
      %s19 = sadd.s32 %s12, 1
      %s20 = ssub.s32 %s12, %s19
      %p21 = scmp.eq.s32.totalorder %s20, 0
      %s23 = sadd.s32 %s22, 1
      %s24 = scalar_select %p21, %s22, %s23
      %p27 = pneg %p21
      %p28 = scmp.eq.s32.totalorder %s12, 1
      %p29 = por %p27, %p28
      %p30 = scmp.ne.s32.totalorder %s22, %s25
      %p31 = scmp.eq.s32.totalorder %s12, 0
      %p32 = por %p30, %p31
      %p33 = scmp.ne.s32.totalorder %s22, %s25
      %p34 = scmp.eq.s32.totalorder %s17, 1
      %p35 = por %p33, %p34
      %p36 = scmp.ne.s32.totalorder %s25, %s26
      %p37 = scmp.eq.s32.totalorder %s17, 0
      %p38 = por %p36, %p37
      %p39 = scmp.ne.s32.totalorder %s25, %s26
      %p40 = scmp.eq.s32.totalorder %s18, 1
      %p41 = por %p39, %p40
      %p43 = scmp.ne.s32.totalorder %s26, %s42
      %p44 = scmp.eq.s32.totalorder %s18, 0
      %p45 = por %p43, %p44
      %s47 = sadd.s32 %s46, 1
      %p50 = scmp.eq.s32.totalorder %s12, 1
      %p51 = scmp.ne.s32.totalorder %s46, %s48
      %p52 = scmp.eq.s32.totalorder %s12, 0
      %p53 = por %p51, %p52
      %p54 = scmp.ne.s32.totalorder %s46, %s48
      %p55 = scmp.eq.s32.totalorder %s17, 1
      %p56 = por %p54, %p55
      %p57 = scmp.ne.s32.totalorder %s48, %s49
      %p58 = scmp.eq.s32.totalorder %s17, 0
      %p59 = por %p57, %p58
      %p60 = scmp.ne.s32.totalorder %s48, %s49
      %p61 = scmp.eq.s32.totalorder %s18, 1
      %p62 = por %p60, %p61
      %p64 = scmp.ne.s32.totalorder %s49, %s63
      %p65 = scmp.eq.s32.totalorder %s18, 0
      %p66 = por %p64, %p65
      %s68 = sadd.s32 %s67, 1
      %p71 = scmp.eq.s32.totalorder %s12, 1
      %p72 = scmp.ne.s32.totalorder %s67, %s69
      %p73 = scmp.eq.s32.totalorder %s12, 0
      %p74 = por %p72, %p73
      %p75 = scmp.ne.s32.totalorder %s67, %s69
      %p76 = scmp.eq.s32.totalorder %s17, 1
      %p77 = por %p75, %p76
      %p78 = scmp.ne.s32.totalorder %s69, %s70
      %p79 = scmp.eq.s32.totalorder %s17, 0
      %p80 = por %p78, %p79
      %p81 = scmp.ne.s32.totalorder %s69, %s70
      %p82 = scmp.eq.s32.totalorder %s18, 1
      %p83 = por %p81, %p82
      %p85 = scmp.ne.s32.totalorder %s70, %s84
      %p86 = scmp.eq.s32.totalorder %s18, 0
      %p87 = por %p85, %p86
      %s88 = ssub.s32 %s12, %s19
      %p89 = scmp.eq.s32.totalorder %s88, 0
      %s91 = sadd.s32 %s90, 1
      %s92 = scalar_select %p89, %s90, %s91
      %p95 = pneg %p89
      %p96 = scmp.eq.s32.totalorder %s12, 1
      %p97 = por %p95, %p96
      %p98 = scmp.ne.s32.totalorder %s90, %s93
      %p99 = scmp.eq.s32.totalorder %s12, 0
      %p100 = por %p98, %p99
      %p101 = scmp.ne.s32.totalorder %s90, %s93
      %p102 = scmp.eq.s32.totalorder %s17, 1
      %p103 = por %p101, %p102
      %p104 = scmp.ne.s32.totalorder %s93, %s94
      %p105 = scmp.eq.s32.totalorder %s17, 0
      %p106 = por %p104, %p105
      %p107 = scmp.ne.s32.totalorder %s93, %s94
      %p108 = scmp.eq.s32.totalorder %s18, 1
      %p109 = por %p107, %p108
      %p111 = scmp.ne.s32.totalorder %s94, %s110
      %p112 = scmp.eq.s32.totalorder %s18, 0
      %p113 = por %p111, %p112
      %p114 = scmp.le.s32.totalorder 1, %s12
      %p115 = scmp.lt.s32.totalorder %s12, 3
      %p116 = pnand %p114, %p115
      %p117 = pneg %p116
      // Predicated region
      $region9: #{_hybrid_embed_tokens.1} parent=5 // pred_check
        _
      $region10: #{_hybrid_embed_tokens.1} parent=5 // pred_check_branch
        %119 = sbr.rel (%p116) target = $region12
      $region11: #{_hybrid_embed_tokens.1} parent=5 // pred_region
        %s120 = ssub.s32 %s12, 1
        // Predicated region
        $region13: #{_hybrid_embed_tokens.1} parent=11 // pred_check
          %p121 = pneg %p59
        $region14: #{_hybrid_embed_tokens.1} parent=11 // pred_check_branch
          %123 = sbr.rel (%p121) target = $region16
        $region15: #{_hybrid_embed_tokens.1} parent=11 // pred_region
          _
        $region16: #{_hybrid_embed_tokens.1} parent=11 // pred_fallthru
          _
        // Predicated region
        $region17: #{_hybrid_embed_tokens.1} parent=11 // pred_check
          %p124 = pneg %p80
        $region18: #{_hybrid_embed_tokens.1} parent=11 // pred_check_branch
          %126 = sbr.rel (%p124) target = $region20
        $region19: #{_hybrid_embed_tokens.1} parent=11 // pred_region
          _
        $region20: #{_hybrid_embed_tokens.1} parent=11 // pred_fallthru
          _
      $region12: #{_hybrid_embed_tokens.1} parent=5 // pred_fallthru
        _
      %p127 = scmp.lt.s32.totalorder %s12, 2
      // Predicated region
      $region21: #{_hybrid_embed_tokens.1} parent=5 // pred_check
        %p128 = pneg %p127
      $region22: #{_hybrid_embed_tokens.1} parent=5 // pred_check_branch
        %130 = sbr.rel (%p128) target = $region24
      $region23: #{_hybrid_embed_tokens.1} parent=5 // pred_region
        // Predicated region
        $region25: #{_hybrid_embed_tokens.1} parent=23 // pred_check
          %p131 = pneg %p32
        $region26: #{_hybrid_embed_tokens.1} parent=23 // pred_check_branch
          %133 = sbr.rel (%p131) target = $region28
        $region27: #{_hybrid_embed_tokens.1} parent=23 // pred_region
          %s134 = smul.u32 2, %s12
          %p135 = scmp.lt.s32.totalorder %s134, 3
          %s136 = scalar_select %p135, %s134, 3
          %s137 = smul.addr %s136, 8
          %s138 = scalar_lea.vmem %s0, %s137
          %s139 = smul.u32 2, %s12
        $region28: #{_hybrid_embed_tokens.1} parent=23 // pred_fallthru
          _
      $region24: #{_hybrid_embed_tokens.1} parent=5 // pred_fallthru
        _
      %p140 = scmp.le.s32.totalorder 1, %s12
      %p141 = scmp.lt.s32.totalorder %s12, 3
      %p142 = pnand %p140, %p141
      %p143 = pneg %p142
      // Predicated region
      $region29: #{_hybrid_embed_tokens.1} parent=5 // pred_check
        _
      $region30: #{_hybrid_embed_tokens.1} parent=5 // pred_check_branch
        %145 = sbr.rel (%p142) target = $region32
      $region31: #{_hybrid_embed_tokens.1} parent=5 // pred_region
        %s146 = ssub.s32 %s12, 1
        %s147 = smul.u32 2, %s17
        %p148 = scmp.lt.s32.totalorder %s147, 3
        %s149 = scalar_select %p148, %s147, 3
        %s150 = smul.addr %s149, 8
        %s151 = scalar_lea.vmem %s0, %s150
        %p152 = pneg %p38
        %p153 = pneg %p35
        %p154 = pneg %p59
        %p155 = pneg %p56
        %p156 = pneg %p80
        %p157 = pneg %p77
        %p158 = pneg %p106
        %p159 = pneg %p103
        %s160 = sand.u32 %s93, 1
        %s161 = scalar_lea.sflag [#allocation3], %s160
        %s162 = sand.u32 %s93, 1
        %s163 = smul.addr %s162, 16
        %s164 = scalar_lea.vmem [#allocation2], %s163
        %s165 = smul.u32 2, %s17
        %p166 = scmp.lt.s32.totalorder %s165, 3
        %s167 = scalar_select %p166, %s165, 3
        %s168 = smul.addr %s167, 8
        %s169 = scalar_lea.vmem %s0, %s168
        %s170 = smul.u32 2, %s17
        %s171 = smul.u32 2, %s17
        %v172 = vld [vmem:[%s169] sm:$0xff]
        %v173 = vld [vmem:[%s169 + $0x8] sm:$0xff]
        %v174 = vld [vmem:[%s1] sm:$0xff]
        %v175 = vld [vmem:[%s1 + $0x8] sm:$0xff]
        %v176 = vld [vmem:[%s1 + $0x10] sm:$0xff]
        %v177 = vld [vmem:[%s1 + $0x18] sm:$0xff]
        %v178 = vld [vmem:[%s1 + $0x20] sm:$0xff]
        %v179 = vld [vmem:[%s1 + $0x28] sm:$0xff]
        %v180 = vld [vmem:[%s1 + $0x30] sm:$0xff]
        %v181 = vld [vmem:[%s1 + $0x38] sm:$0xff]
        %v182 = vld [vmem:[%s2] sm:$0x1]
        %v184 = vperm.slane %v182, 0
        %vm186 = vcmask 523264
        %v188 = vsel %vm186, %v172, 0
        %v191 = vsel %vm186, %v173, 0
        %193 = vmatpush.msra.mxu0 0.0
        %194 = vmatpush.msra.mxu0 0.0
        %195 = vmatpush.msra.mxu0 0.0
        %196 = vmatpush.msra.mxu0 0.0
        %197 = vmatpush.msra.mxu0 0.0
        %198 = vmatpush.msra.mxu0 0.0
        %199 = vmatpush.msra.mxu0 0.0
        %200 = vmatpush.msra.mxu0 0.0
        %201 = vmatpush.msra.mxu0 %v181
        %202 = vmatpush.msra.mxu0 %v180
        %203 = vmatpush.msra.mxu0 %v179
        %204 = vmatpush.msra.mxu0 %v178
        %205 = vmatpush.msra.mxu0 %v177
        %206 = vmatpush.msra.mxu0 %v176
        %207 = vmatpush.msra.mxu0 %v175
        %208 = vmatpush.msra.mxu0 %v174
        %209 = vmatmul.f32.gmra.mxu0 %v188
        %v210 = vpop.f32.mrf.mxu0
        %v211 = vadd.f32 %v184, %v210
        %212 = vmatmul.f32.gmra.mxu0 %v191
        %v213 = vpop.f32.mrf.mxu0
        %v214 = vadd.f32 %v184, %v213
        %215 = vdwg.mxu0
        %216 = vst [vmem:[%s164] sm:$0xff] %v211
        %217 = vst [vmem:[%s164 + $0x8] sm:$0xff] %v214
        %s218 = sand.u32 %s93, 1
        %s219 = scalar_lea.sflag [#allocation3], %s218
        %s220 = sand.u32 %s93, 1
        %s221 = smul.addr %s220, 16
        %s222 = scalar_lea.vmem [#allocation2], %s221
        // Predicated region
        $region33: #{_hybrid_embed_tokens.1} parent=31 // pred_check
          %p223 = pneg %p103
        $region34: #{_hybrid_embed_tokens.1} parent=31 // pred_check_branch
          %225 = sbr.rel (%p223) target = $region36
        $region35: #{_hybrid_embed_tokens.1} parent=31 // pred_region
          %s226 = smul.u32 2, %s17
          %228 = vsyncadd %s219, 0
          %s229 = smul.addr %s226, 8
          %s230 = scalar_lea.hbm %s3, %s229
          %s231 = sshll.u32 %s222, 4
          %s232 = int_to_ptr.vmem [resolvable:$true] %s231
          %s233 = sshll.u32 %s230, 4
          %s234 = int_to_ptr.hbm [resolvable:$true] %s233
          %239 = dma.vmem_to_hbm [thread:$0]  %s232, 256, %s234, %s219, 128, 128, 8
        $region36: #{_hybrid_embed_tokens.1} parent=31 // pred_fallthru
          _
      $region32: #{_hybrid_embed_tokens.1} parent=5 // pred_fallthru
        _
      %p240 = scmp.le.s32.totalorder 2, %s12
      // Predicated region
      $region37: #{_hybrid_embed_tokens.1} parent=5 // pred_check
        %p241 = pneg %p240
      $region38: #{_hybrid_embed_tokens.1} parent=5 // pred_check_branch
        %243 = sbr.rel (%p241) target = $region40
      $region39: #{_hybrid_embed_tokens.1} parent=5 // pred_region
        %s244 = ssub.s32 %s12, 2
        // Predicated region
        $region41: #{_hybrid_embed_tokens.1} parent=39 // pred_check
          %p245 = pneg %p109
        $region42: #{_hybrid_embed_tokens.1} parent=39 // pred_check_branch
          %247 = sbr.rel (%p245) target = $region44
        $region43: #{_hybrid_embed_tokens.1} parent=39 // pred_region
          %s248 = sand.u32 %s94, 1
          %s249 = scalar_lea.sflag [#allocation3], %s248
          %s250 = sand.u32 %s94, 1
          %s251 = smul.addr %s250, 16
          %s252 = scalar_lea.vmem [#allocation2], %s251
          %254 = dma.done %s249, 256
        $region44: #{_hybrid_embed_tokens.1} parent=39 // pred_fallthru
          _
      $region40: #{_hybrid_embed_tokens.1} parent=5 // pred_fallthru
        _
    $region6: #{_hybrid_embed_tokens.1} parent=1 // loop_footer
      %s16 = sadd.s32 1, %s12
    $region7: #{_hybrid_embed_tokens.1} parent=1 // loop_footer_branch
      %11 = sbr.rel target = $region3
    $region8: #{_hybrid_embed_tokens.1} parent=1 // loop_exit
      _
    %255 = vsyncpa [#allocation3], 1
    %s256 = scalar_lea.sflag [#allocation3], 1
    %257 = vsyncpa %s256, 1

</llo_original>
